<compile_context>
chip_gen: v5e
topology: v5e:2x2
jax: 0.10.0
libtpu: 0.0.40
codegen_flags: <defaults>
</compile_context>

<pallas_src>
import functools
import math

import jax
import jax.numpy as jnp
import numpy as np
from jax import lax
from jax.experimental import pallas as pl
from jax.experimental.pallas import tpu as pltpu

# ------------------------- hyper-parameters (module __init__) ---------------
OMEGA = 14.0
EPSILON = 1.0
THETA = 0.5
ALPHA = 2.1
WEIGHTED_MAP = True
MASK_W = 10.0
MASK_THRESHOLD = 0.2
LN_RATIO = math.log(THETA / EPSILON)        # ln(theta/epsilon)

# Per-input block element budget (1 MiB of f32). With ~8-12 live block-sized
# f32 temporaries + 2 inputs x 2 pipeline buffers this stays well inside the
# 32 MiB scoped-VMEM limit on every generation (incl. v7x's 64 MiB physical).
_BLOCK_ELEM_CAP = 256 * 1024


def _awing_kernel(pred_ref, tgt_ref, out_ref, *, H, W, TB, NCp, weighted_map,
                  need_row_mask):
    """One grid step: (TB, H*W) slab of heatmaps. Writes per-lane partial sums."""
    HW = H * W
    p = pred_ref[...].astype(jnp.float32)   # (TB, HW)
    t = tgt_ref[...].astype(jnp.float32)

    a_t = ALPHA - t
    # (theta/eps)^(alpha - t) == exp((alpha - t) * ln(theta/eps))   (1 EUP op)
    pow1 = jnp.exp(a_t * LN_RATIO)
    denom = 1.0 + pow1
    inv1 = pl.reciprocal(denom, approx=True)
    inv1 = inv1 * (2.0 - denom * inv1)        # one Newton step -> ~f32 accuracy
    # A = omega * inv1 * (alpha-t) * (theta/eps)^(alpha-t-1) / eps
    #   = (omega/theta) * (alpha-t) * pow1 * inv1      (epsilon cancels exactly)
    A = (OMEGA / THETA) * a_t * pow1 * inv1
    C = THETA * A - OMEGA * jnp.log1p(pow1)

    diff = jnp.abs(p - t)
    d = diff if EPSILON == 1.0 else diff * (1.0 / EPSILON)
    small = OMEGA * jnp.log1p(jnp.power(d, a_t))
    loss = jnp.where(diff < THETA, small, A * diff - C)

    if weighted_map:
        # Separable 3x3 grey dilation (max filter) with edge clipping, done
        # entirely with lane rotations (pltpu.roll follows jnp.roll semantics:
        # result[k] = x[k - shift mod HW]) + boundary masks. Each heatmap is
        # one row of the 2D block, so rotations never mix heatmaps.
        lane = lax.broadcasted_iota(jnp.int32, t.shape, 1)
        if (W & (W - 1)) == 0:
            col = lane & (W - 1)
        else:
            col = lane % W   # TODO(synk): non-power-of-2 W uses vector int rem
        left = pltpu.roll(t, 1, axis=1)           # value from pixel k-1
        right = pltpu.roll(t, HW - 1, axis=1)     # value from pixel k+1
        h = jnp.maximum(t, jnp.maximum(jnp.where(col > 0, left, t),
                                       jnp.where(col < W - 1, right, t)))
        up = pltpu.roll(h, W, axis=1)             # value from pixel k-W
        down = pltpu.roll(h, HW - W, axis=1)      # value from pixel k+W
        dil = jnp.maximum(h, jnp.maximum(jnp.where(lane >= W, up, h),
                                         jnp.where(lane < HW - W, down, h)))
        loss = loss * jnp.where(dil > MASK_THRESHOLD, MASK_W + 1.0, 1.0)

    if need_row_mask:
        # Last grid step may read past the end of the (padded) array; zero it.
        row = pl.program_id(0) * TB + lax.broadcasted_iota(jnp.int32, loss.shape, 0)
        loss = jnp.where(row < NCp, loss, 0.0)

    # Per-lane partial sums: sublane reduce only, lane-dense (1,1,HW) store.
    out_ref[...] = jnp.sum(loss, axis=0, keepdims=True)[None]


def awing_loss(prediction, target, *, weighted_map=WEIGHTED_MAP):
    """AWingLoss forward. prediction/target: (N, C, H, W). Returns scalar mean."""
    assert prediction.shape == target.shape
    N, C, H, W = prediction.shape
    NC, HW = N * C, H * W

    # Free row-major reshape (zero data movement): each row = one heatmap.
    pred2 = jnp.reshape(prediction, (NC, HW))
    tgt2 = jnp.reshape(target, (NC, HW))

    itemsize = jnp.dtype(prediction.dtype).itemsize
    sub = {4: 8, 2: 16, 1: 32}.get(itemsize, 8)      # sublane tile for dtype

    # Pad the heatmap axis to the sublane tile only if needed (padded rows
    # contribute exactly zero loss: diff=0 -> log1p(0)=0; dilated 0 -> mask 1).
    NCp = NC
    if NC % sub != 0:
        NCp = -(-NC // sub) * sub
        pred2 = jnp.pad(pred2, ((0, NCp - NC), (0, 0)))
        tgt2 = jnp.pad(tgt2, ((0, NCp - NC), (0, 0)))

    cap = max(sub, (_BLOCK_ELEM_CAP // HW) // sub * sub)
    if NCp <= cap:
        if NCp >= 2 * sub and NCp % (2 * sub) == 0:
            TB = NCp // 2          # >=2 grid steps: megacore + DMA pipelining
        else:
            TB = NCp               # tiny input: single lane-dense block
    else:
        TB = cap
    G = pl.cdiv(NCp, TB)
    need_row_mask = (NCp % TB) != 0     # partial last block -> mask in kernel

    kernel = functools.partial(_awing_kernel, H=H, W=W, TB=TB, NCp=NCp,
                               weighted_map=weighted_map,
                               need_row_mask=need_row_mask)

    cost = pl.CostEstimate(
        flops=int(30 * NC * HW),
        transcendentals=int(6 * NC * HW),
        bytes_accessed=int(2 * NC * HW * itemsize + G * HW * 4),
    )

    partials = pl.pallas_call(
        kernel,
        out_shape=jax.ShapeDtypeStruct((G, 1, HW), jnp.float32),
        grid_spec=pltpu.PrefetchScalarGridSpec(
            num_scalar_prefetch=0,
            grid=(G,),
            in_specs=[
                pl.BlockSpec((TB, HW), lambda g: (g, 0)),
                pl.BlockSpec((TB, HW), lambda g: (g, 0)),
            ],
            out_specs=pl.BlockSpec((1, 1, HW), lambda g: (g, 0, 0)),
        ),
        compiler_params=pltpu.CompilerParams(
            # independent per-block partial sums -> fully parallel grid
            dimension_semantics=("parallel",),
            vmem_limit_bytes=32 * 1024 * 1024,
        ),
        cost_estimate=cost,
    )(pred2, tgt2)

    return jnp.sum(partials) / jnp.float32(N * C * H * W)


# ----------------------------- pure-JAX reference ----------------------------
def _awing_loss_ref(prediction, target, weighted_map=WEIGHTED_MAP):
    t = target.astype(jnp.float32)
    p = prediction.astype(jnp.float32)
    ratio = THETA / EPSILON
    pow1 = jnp.power(ratio, ALPHA - t)
    pow2 = jnp.power(ratio, ALPHA - t - 1.0)
    A = OMEGA * (1.0 / (1.0 + pow1)) * (ALPHA - t) * pow2 * (1.0 / EPSILON)
    C = THETA * A - OMEGA * jnp.log(1.0 + pow1)
    diff = jnp.abs(p - t)
    loss = jnp.where(diff < THETA,
                     OMEGA * jnp.log(1.0 + jnp.power(diff / EPSILON, ALPHA - t)),
                     A * diff - C)
    if weighted_map:
        pad = jnp.pad(t, ((0, 0), (0, 0), (1, 1), (1, 1)),
                      constant_values=-3.0e38)
        dil = t
        for di in range(3):
            for dj in range(3):
                dil = jnp.maximum(
                    dil, pad[:, :, di:di + t.shape[2], dj:dj + t.shape[3]])
        mask = jnp.where(dil > MASK_THRESHOLD, MASK_W, 0.0) + 1.0
        loss = loss * mask
    return jnp.mean(loss)


if __name__ == "__main__":
    key = jax.random.PRNGKey(0)
    k1, k2 = jax.random.split(key)
    N, C, H, W = 2, 4, 16, 16

    # heatmap-like target values in [0, 1], prediction = target + small noise
    target = jax.nn.sigmoid(jax.random.normal(k1, (N, C, H, W), jnp.float32) * 2.0)
    prediction = target + 0.3 * jax.random.normal(k2, (N, C, H, W), jnp.float32)

    out = jax.block_until_ready(awing_loss(prediction, target))
    ref = jax.block_until_ready(_awing_loss_ref(prediction, target))

    assert np.isfinite(float(out))
    assert np.allclose(float(out), float(ref), rtol=1e-4, atol=1e-4), (out, ref)

    print("KERNEL_OK")
</pallas_src>

<mosaic_0001>
module attributes {stable_mosaic.version = 11 : i64} {
  func.func @_awing_kernel(%arg0: i32, %arg1: memref<8x256xf32, #tpu.memory_space<vmem>>, %arg2: memref<8x256xf32, #tpu.memory_space<vmem>>, %arg3: memref<1x1x256xf32, #tpu.memory_space<vmem>>) attributes {dimension_semantics = [#tpu.dimension_semantics<parallel>], iteration_bounds = array<i64: 1>, scalar_prefetch = 0 : i64, scratch_operands = 0 : i64, tpu.core_type = #tpu.core_type<tc>, window_params = [{transform_indices = @transform_0, window_bounds = array<i64: 8, 256>}, {transform_indices = @transform_1, window_bounds = array<i64: 8, 256>}, {transform_indices = @transform_2, window_bounds = array<i64: 1, 1, 256>}]} {
    %c0 = arith.constant 0 : index
    %c0_0 = arith.constant 0 : index
    %0 = vector.load %arg1[%c0, %c0_0] : memref<8x256xf32, #tpu.memory_space<vmem>>, vector<8x256xf32>
    %c0_1 = arith.constant 0 : index
    %c0_2 = arith.constant 0 : index
    %1 = vector.load %arg2[%c0_1, %c0_2] : memref<8x256xf32, #tpu.memory_space<vmem>>, vector<8x256xf32>
    %cst = arith.constant 2.100000e+00 : f32
    %2 = vector.broadcast %cst : f32 to vector<8x256xf32>
    %3 = arith.subf %2, %1 : vector<8x256xf32>
    %cst_3 = arith.constant -0.693147182 : f32
    %4 = vector.broadcast %cst_3 : f32 to vector<8x256xf32>
    %5 = arith.mulf %3, %4 : vector<8x256xf32>
    %6 = math.exp %5 : vector<8x256xf32>
    %cst_4 = arith.constant 1.000000e+00 : f32
    %7 = vector.broadcast %cst_4 : f32 to vector<8x256xf32>
    %8 = arith.addf %7, %6 : vector<8x256xf32>
    %9 = tpu.reciprocal %8 {approx = true} : vector<8x256xf32> -> vector<8x256xf32>
    %10 = arith.mulf %8, %9 : vector<8x256xf32>
    %cst_5 = arith.constant 2.000000e+00 : f32
    %11 = vector.broadcast %cst_5 : f32 to vector<8x256xf32>
    %12 = arith.subf %11, %10 : vector<8x256xf32>
    %13 = arith.mulf %9, %12 : vector<8x256xf32>
    %cst_6 = arith.constant 2.800000e+01 : f32
    %14 = vector.broadcast %cst_6 : f32 to vector<8x256xf32>
    %15 = arith.mulf %14, %3 : vector<8x256xf32>
    %16 = arith.mulf %15, %6 : vector<8x256xf32>
    %17 = arith.mulf %16, %13 : vector<8x256xf32>
    %cst_7 = arith.constant 5.000000e-01 : f32
    %18 = vector.broadcast %cst_7 : f32 to vector<8x256xf32>
    %19 = arith.mulf %18, %17 : vector<8x256xf32>
    %20 = math.log1p %6 : vector<8x256xf32>
    %cst_8 = arith.constant 1.400000e+01 : f32
    %21 = vector.broadcast %cst_8 : f32 to vector<8x256xf32>
    %22 = arith.mulf %21, %20 : vector<8x256xf32>
    %23 = arith.subf %19, %22 : vector<8x256xf32>
    %24 = arith.subf %0, %1 : vector<8x256xf32>
    %25 = math.absf %24 : vector<8x256xf32>
    %26 = math.powf %25, %3 : vector<8x256xf32>
    %27 = math.log1p %26 : vector<8x256xf32>
    %cst_9 = arith.constant 1.400000e+01 : f32
    %28 = vector.broadcast %cst_9 : f32 to vector<8x256xf32>
    %29 = arith.mulf %28, %27 : vector<8x256xf32>
    %cst_10 = arith.constant 5.000000e-01 : f32
    %30 = vector.broadcast %cst_10 : f32 to vector<8x256xf32>
    %31 = arith.cmpf olt, %25, %30 : vector<8x256xf32>
    %32 = arith.mulf %17, %25 : vector<8x256xf32>
    %33 = arith.subf %32, %23 : vector<8x256xf32>
    %34 = arith.select %31, %29, %33 : vector<8x256xi1>, vector<8x256xf32>
    %35 = tpu.iota {dimensions = array<i32: 1>} : vector<8x256xi32>
    %c15_i32 = arith.constant 15 : i32
    %36 = vector.broadcast %c15_i32 : i32 to vector<8x256xi32>
    %37 = arith.andi %35, %36 : vector<8x256xi32>
    %c1_i32 = arith.constant 1 : i32
    %38 = tpu.dynamic_rotate %1 by %c1_i32 dim 1 : vector<8x256xf32>, i32 -> vector<8x256xf32>
    %c255_i32 = arith.constant 255 : i32
    %39 = tpu.dynamic_rotate %1 by %c255_i32 dim 1 : vector<8x256xf32>, i32 -> vector<8x256xf32>
    %c0_i32 = arith.constant 0 : i32
    %40 = vector.broadcast %c0_i32 : i32 to vector<8x256xi32>
    %41 = arith.cmpi sgt, %37, %40 : vector<8x256xi32>
    %42 = arith.select %41, %38, %1 : vector<8x256xi1>, vector<8x256xf32>
    %c15_i32_11 = arith.constant 15 : i32
    %43 = vector.broadcast %c15_i32_11 : i32 to vector<8x256xi32>
    %44 = arith.cmpi slt, %37, %43 : vector<8x256xi32>
    %45 = arith.select %44, %39, %1 : vector<8x256xi1>, vector<8x256xf32>
    %46 = arith.maximumf %42, %45 : vector<8x256xf32>
    %47 = arith.maximumf %1, %46 : vector<8x256xf32>
    %c16_i32 = arith.constant 16 : i32
    %48 = tpu.dynamic_rotate %47 by %c16_i32 dim 1 : vector<8x256xf32>, i32 -> vector<8x256xf32>
    %c240_i32 = arith.constant 240 : i32
    %49 = tpu.dynamic_rotate %47 by %c240_i32 dim 1 : vector<8x256xf32>, i32 -> vector<8x256xf32>
    %c16_i32_12 = arith.constant 16 : i32
    %50 = vector.broadcast %c16_i32_12 : i32 to vector<8x256xi32>
    %51 = arith.cmpi sge, %35, %50 : vector<8x256xi32>
    %52 = arith.select %51, %48, %47 : vector<8x256xi1>, vector<8x256xf32>
    %c240_i32_13 = arith.constant 240 : i32
    %53 = vector.broadcast %c240_i32_13 : i32 to vector<8x256xi32>
    %54 = arith.cmpi slt, %35, %53 : vector<8x256xi32>
    %55 = arith.select %54, %49, %47 : vector<8x256xi1>, vector<8x256xf32>
    %56 = arith.maximumf %52, %55 : vector<8x256xf32>
    %57 = arith.maximumf %47, %56 : vector<8x256xf32>
    %cst_14 = arith.constant 2.000000e-01 : f32
    %58 = vector.broadcast %cst_14 : f32 to vector<8x256xf32>
    %59 = arith.cmpf ogt, %57, %58 : vector<8x256xf32>
    %cst_15 = arith.constant 1.100000e+01 : f32
    %cst_16 = arith.constant 1.000000e+00 : f32
    %60 = vector.broadcast %cst_15 : f32 to vector<8x256xf32>
    %61 = vector.broadcast %cst_16 : f32 to vector<8x256xf32>
    %62 = arith.select %59, %60, %61 : vector<8x256xi1>, vector<8x256xf32>
    %63 = arith.mulf %34, %62 : vector<8x256xf32>
    %cst_17 = arith.constant dense<0.000000e+00> : vector<256xf32>
    %64 = vector.multi_reduction <add>, %63, %cst_17 [0] : vector<8x256xf32> to vector<256xf32>
    %65 = vector.shape_cast %64 : vector<256xf32> to vector<1x256xf32>
    %66 = vector.shape_cast %65 : vector<1x256xf32> to vector<1x1x256xf32>
    %c0_18 = arith.constant 0 : index
    %c0_19 = arith.constant 0 : index
    %c0_20 = arith.constant 0 : index
    %67 = vector.load %arg3[%c0_18, %c0_19, %c0_20] : memref<1x1x256xf32, #tpu.memory_space<vmem>>, vector<1x1x256xf32>
    tpu.vector_store %arg3[%c0_18, %c0_19, %c0_20], %66 {strides = array<i32>} : memref<1x1x256xf32, #tpu.memory_space<vmem>>, vector<1x1x256xf32>,
    return
  }
  func.func @transform_0(%arg0: i32) -> (i32, i32) {
    %c0_i32 = arith.constant 0 : i32
    %c0_i32_0 = arith.constant 0 : i32
    return %arg0, %c0_i32 : i32, i32
  }
  func.func @transform_1(%arg0: i32) -> (i32, i32) {
    %c0_i32 = arith.constant 0 : i32
    %c0_i32_0 = arith.constant 0 : i32
    return %arg0, %c0_i32 : i32, i32
  }
  func.func @transform_2(%arg0: i32) -> (i32, i32, i32) {
    %c0_i32 = arith.constant 0 : i32
    %c0_i32_0 = arith.constant 0 : i32
    %c0_i32_1 = arith.constant 0 : i32
    return %arg0, %c0_i32, %c0_i32_0 : i32, i32, i32
  }
}

</mosaic_0001>

<llo_original>
// kernel: tpu_custom_call.1
$region0: #{tpu_custom_call.1}
  #allocation0 [shape = 'u32[]', space=smem, size = 0x4, offset = 0x4, fixed_abs, tag = 'smem constant byte address 0x4 - core index']
  #allocation1 [shape = 'u32[72,128]{1,0:T(1,128)}', space=vmem, size = 0x9000, scoped, tag = 'internal scratch']
  %s0 = inlined_call_operand.hbm [shape: f32[8,256], index: 0, kind: input, shape index: {}]
  %s1 = inlined_call_operand.hbm [shape: f32[8,256], index: 1, kind: input, shape index: {}]
  %s2 = inlined_call_operand.hbm [shape: f32[1,1,256], index: 2, kind: output, shape index: {}]
  %s3 = sld [smem:[#allocation0]]
  $region26: #{tpu_custom_call.1} parent=0
    _
  %s5 = ssub.s32 1, %s3
  %s6 = scalar_select 0, %s5, %s3
  $region1: #{tpu_custom_call.1} parent=0
    #allocation2 [shape = 'u8[8192]{0}', space=vmem, size = 0x2000, scoped, tag = 'input window, operand 0, single buffered']
    #allocation3 [shape = 's32[1]{0}', space=sflag, size = 0x4, scoped, tag = 'scoped memory for tpu_custom_call.1']
    #allocation4 [shape = 's32[1]{0}', space=sflag, size = 0x4, scoped, tag = 'scoped memory for tpu_custom_call.1']
    #allocation5 [shape = 'u8[8192]{0}', space=vmem, size = 0x2000, scoped, tag = 'input window, operand 1, single buffered']
    #allocation6 [shape = 's32[1]{0}', space=sflag, size = 0x4, scoped, tag = 'scoped memory for tpu_custom_call.1']
    #allocation7 [shape = 'u8[1024]{0}', space=vmem, size = 0x400, scoped, tag = 'output window, operand 0, single buffered']
    %7 = vsyncpa [#allocation3], 0
    %8 = vsyncpa [#allocation6], 0
    %9 = vsyncpa [#allocation4], 0
    // Predicated region
    $region2: #{tpu_custom_call.1} parent=1 // pred_check
      _
    $region3: #{tpu_custom_call.1} parent=1 // pred_check_branch
      %11 = sbr.rel (0) target = $region5
    $region4: #{tpu_custom_call.1} parent=1 // pred_region
      %13 = vsyncadd [#allocation3], 0
      %s15 = sshll.u32 %s0, 4
      %s16 = int_to_ptr.hbm [resolvable:$true] %s15
      %s17 = sshll.u32 [#allocation2], 4
      %s18 = int_to_ptr.vmem [resolvable:$true] %s17
      %20 = dma.hbm_to_vmem [thread:$0]  %s16, 256, %s18, [#allocation3]
    $region5: #{tpu_custom_call.1} parent=1 // pred_fallthru
      _
    // Predicated region
    $region6: #{tpu_custom_call.1} parent=1 // pred_check
      _
    $region7: #{tpu_custom_call.1} parent=1 // pred_check_branch
      %22 = sbr.rel (0) target = $region9
    $region8: #{tpu_custom_call.1} parent=1 // pred_region
      %24 = vsyncadd [#allocation6], 0
      %s26 = sshll.u32 %s1, 4
      %s27 = int_to_ptr.hbm [resolvable:$true] %s26
      %s28 = sshll.u32 [#allocation5], 4
      %s29 = int_to_ptr.vmem [resolvable:$true] %s28
      %31 = dma.hbm_to_vmem [thread:$0]  %s27, 256, %s29, [#allocation6]
    $region9: #{tpu_custom_call.1} parent=1 // pred_fallthru
      _
    // Predicated region
    $region10: #{tpu_custom_call.1} parent=1 // pred_check
      _
    $region11: #{tpu_custom_call.1} parent=1 // pred_check_branch
      %33 = sbr.rel (0) target = $region13
    $region12: #{tpu_custom_call.1} parent=1 // pred_region
      %35 = dma.done [#allocation3], 256
    $region13: #{tpu_custom_call.1} parent=1 // pred_fallthru
      _
    // Predicated region
    $region14: #{tpu_custom_call.1} parent=1 // pred_check
      _
    $region15: #{tpu_custom_call.1} parent=1 // pred_check_branch
      %37 = sbr.rel (0) target = $region17
    $region16: #{tpu_custom_call.1} parent=1 // pred_region
      %39 = dma.done [#allocation6], 256
    $region17: #{tpu_custom_call.1} parent=1 // pred_fallthru
      _
    %v40 = vld [vmem:[#allocation2] sm:$0xff]
    %v41 = vld [vmem:[#allocation2 + $0x8] sm:$0xff]
    %v42 = vld [vmem:[#allocation5] sm:$0xff]
    %v43 = vld [vmem:[#allocation5 + $0x8] sm:$0xff]
    %v44 = vsub.f32 2.1, %v42
    %v45 = vsub.f32 2.1, %v43
    %v46 = vmul.f32 %v44, -0.6931472
    %v47 = vmul.f32 %v45, -0.6931472
    %v48 = vmul.f32 %v46, 1.442695
    %v49 = vpow.pop %v48
    %v50 = vmul.f32 %v47, 1.442695
    %v51 = vpow.pop %v50
    %v52 = vadd.f32 %v49, 1.0
    %v53 = vadd.f32 %v51, 1.0
    %v54 = vrcp.pop %v52
    %v55 = vrcp.pop %v53
    %v56 = vmul.f32 %v52, %v54
    %v57 = vmul.f32 %v53, %v55
    %v58 = vsub.f32 2.0, %v56
    %v59 = vsub.f32 2.0, %v57
    %v60 = vmul.f32 %v54, %v58
    %v61 = vmul.f32 %v55, %v59
    %v62 = vmul.f32 %v44, 28.0
    %v63 = vmul.f32 %v45, 28.0
    %v64 = vmul.f32 %v62, %v49
    %v65 = vmul.f32 %v63, %v51
    %v66 = vmul.f32 %v64, %v60
    %v67 = vmul.f32 %v65, %v61
    %v68 = vmul.f32 %v66, 0.5
    %v69 = vmul.f32 %v67, 0.5
    %v70 = vadd.f32 %v49, 1.0
    %v71 = vlog2.pop %v70
    %v72 = vmul.f32 %v71, 0.6931472
    %v73 = vmul.f32 -0.5, %v49
    %v74 = vadd.f32 %v73, 1.0
    %v75 = vmul.f32 %v74, %v49
    %v76 = vand.u32 2147483647, %v49
    %vm77 = vcmp.lt.f32.partialorder %v76, 0.0004427343
    %v78 = vsel %vm77, %v75, %v72
    %v79 = vadd.f32 %v51, 1.0
    %v80 = vlog2.pop %v79
    %v81 = vmul.f32 %v80, 0.6931472
    %v82 = vmul.f32 -0.5, %v51
    %v83 = vadd.f32 %v82, 1.0
    %v84 = vmul.f32 %v83, %v51
    %v85 = vand.u32 2147483647, %v51
    %vm86 = vcmp.lt.f32.partialorder %v85, 0.0004427343
    %v87 = vsel %vm86, %v84, %v81
    %v88 = vmul.f32 %v78, 14.0
    %v89 = vmul.f32 %v87, 14.0
    %v90 = vsub.f32 %v68, %v88
    %v91 = vsub.f32 %v69, %v89
    %v92 = vsub.f32 %v40, %v42
    %v93 = vsub.f32 %v41, %v43
    %v94 = vand.u32 2147483647, %v92
    %v95 = vand.u32 2147483647, %v93
    %v96 = vpow.f32 %v94, %v44
    %v97 = vpow.f32 %v95, %v45
    %v98 = vadd.f32 %v96, 1.0
    %v99 = vlog2.pop %v98
    %v100 = vmul.f32 %v99, 0.6931472
    %v101 = vmul.f32 -0.5, %v96
    %v102 = vadd.f32 %v101, 1.0
    %v103 = vmul.f32 %v102, %v96
    %v104 = vand.u32 2147483647, %v96
    %vm105 = vcmp.lt.f32.partialorder %v104, 0.0004427343
    %v106 = vsel %vm105, %v103, %v100
    %v107 = vadd.f32 %v97, 1.0
    %v108 = vlog2.pop %v107
    %v109 = vmul.f32 %v108, 0.6931472
    %v110 = vmul.f32 -0.5, %v97
    %v111 = vadd.f32 %v110, 1.0
    %v112 = vmul.f32 %v111, %v97
    %v113 = vand.u32 2147483647, %v97
    %vm114 = vcmp.lt.f32.partialorder %v113, 0.0004427343
    %v115 = vsel %vm114, %v112, %v109
    %v116 = vmul.f32 %v106, 14.0
    %v117 = vmul.f32 %v115, 14.0
    %vm118 = vcmp.lt.f32.partialorder %v94, 0.5
    %vm119 = vcmp.lt.f32.partialorder %v95, 0.5
    %v120 = vmul.f32 %v66, %v94
    %v121 = vmul.f32 %v67, %v95
    %v122 = vsub.f32 %v120, %v90
    %v123 = vsub.f32 %v121, %v91
    %v124 = vsel %vm118, %v116, %v122
    %v125 = vsel %vm119, %v117, %v123
    %v126 = vlaneseq
    %v127 = vand.u32 %v126, 127
    %v128 = vadd.s32 %v127, 128
    %v129 = vand.u32 %v127, 15
    %v130 = vand.u32 %v128, 15
    %131 = vrot.lane.b32.xlu0 %v42, 1
    %v132 = vpop.permute.xlu0 %131
    %133 = vrot.lane.b32.xlu0 %v43, 1
    %v134 = vpop.permute.xlu0 %133
    %vm135 = vcmp.lt.s32.totalorder %v127, 1
    %v136 = vsel %vm135, %v132, %v134
    %v137 = vsel %vm135, %v134, %v132
    %138 = vrot.lane.b32.xlu0 %v42, 127
    %v139 = vpop.permute.xlu0 %138
    %140 = vrot.lane.b32.xlu0 %v43, 127
    %v141 = vpop.permute.xlu0 %140
    %vm142 = vcmp.lt.s32.totalorder %v127, 127
    %v143 = vsel %vm142, %v139, %v141
    %v144 = vsel %vm142, %v141, %v139
    %vm145 = vcmp.gt.s32.totalorder %v129, 0
    %vm146 = vcmp.gt.s32.totalorder %v130, 0
    %v147 = vsel %vm145, %v137, %v42
    %v148 = vsel %vm146, %v136, %v43
    %vm149 = vcmp.lt.s32.totalorder %v129, 15
    %vm150 = vcmp.lt.s32.totalorder %v130, 15
    %v151 = vsel %vm149, %v143, %v42
    %v152 = vsel %vm150, %v144, %v43
    %v153 = vmax.f32 %v147, %v151
    %v154 = vmax.f32 %v148, %v152
    %v155 = vmax.f32 %v42, %v153
    %v156 = vmax.f32 %v43, %v154
    %157 = vrot.lane.b32.xlu0 %v155, 16
    %v158 = vpop.permute.xlu0 %157
    %159 = vrot.lane.b32.xlu0 %v156, 16
    %v160 = vpop.permute.xlu0 %159
    %vm161 = vcmp.lt.s32.totalorder %v127, 16
    %v162 = vsel %vm161, %v158, %v160
    %v163 = vsel %vm161, %v160, %v158
    %164 = vrot.lane.b32.xlu0 %v155, 112
    %v165 = vpop.permute.xlu0 %164
    %166 = vrot.lane.b32.xlu0 %v156, 112
    %v167 = vpop.permute.xlu0 %166
    %vm168 = vcmp.lt.s32.totalorder %v127, 112
    %v169 = vsel %vm168, %v165, %v167
    %v170 = vsel %vm168, %v167, %v165
    %vm171 = vcmp.ge.s32.totalorder %v127, 16
    %vm172 = vcmp.ge.s32.totalorder %v128, 16
    %v173 = vsel %vm171, %v163, %v155
    %v174 = vsel %vm172, %v162, %v156
    %vm175 = vcmp.lt.s32.totalorder %v127, 240
    %vm176 = vcmp.lt.s32.totalorder %v128, 240
    %v177 = vsel %vm175, %v169, %v155
    %v178 = vsel %vm176, %v170, %v156
    %v179 = vmax.f32 %v173, %v177
    %v180 = vmax.f32 %v174, %v178
    %v181 = vmax.f32 %v155, %v179
    %v182 = vmax.f32 %v156, %v180
    %vm183 = vcmp.gt.f32.partialorder %v181, 0.2
    %vm184 = vcmp.gt.f32.partialorder %v182, 0.2
    %v185 = vsel %vm183, 11.0, 1.0
    %v186 = vsel %vm184, 11.0, 1.0
    %v187 = vmul.f32 %v124, %v185
    %v188 = vmul.f32 %v125, %v186
    %v189 = vrot.slane %v187, 4
    %v190 = vadd.f32 %v187, %v189
    %v191 = vrot.slane %v190, 2
    %v192 = vadd.f32 %v190, %v191
    %v193 = vrot.slane %v192, 1
    %v194 = vadd.f32 %v192, %v193
    %v195 = vrot.slane %v188, 4
    %v196 = vadd.f32 %v188, %v195
    %v197 = vrot.slane %v196, 2
    %v198 = vadd.f32 %v196, %v197
    %v199 = vrot.slane %v198, 1
    %v200 = vadd.f32 %v198, %v199
    %v203 = vrot.slane %v200, 7
    %vm204 = vcmask 1040384
    %v205 = vsel %vm204, %v194, %v203
    %v207 = vlaneseq
    %vm208 = vcmp.ge.s32.totalorder %v207, 0
    %vm209 = vcmp.lt.s32.totalorder %v207, 256
    %vm210 = vmand %vm208, %vm209
    %211 = vst.msk [vmem:[#allocation7] sm:$0x3] %vm210, %v205
    // Predicated region
    $region18: #{tpu_custom_call.1} parent=1 // pred_check
      _
    $region19: #{tpu_custom_call.1} parent=1 // pred_check_branch
      %213 = sbr.rel (0) target = $region21
    $region20: #{tpu_custom_call.1} parent=1 // pred_region
      %215 = vsyncadd [#allocation4], 0
      %s217 = sshll.u32 [#allocation7], 4
      %s218 = int_to_ptr.vmem [resolvable:$true] %s217
      %s219 = sshll.u32 %s2, 4
      %s220 = int_to_ptr.hbm [resolvable:$true] %s219
      %222 = dma.vmem_to_hbm [thread:$0]  %s218, 32, %s220, [#allocation4]
    $region21: #{tpu_custom_call.1} parent=1 // pred_fallthru
      _
    // Predicated region
    $region22: #{tpu_custom_call.1} parent=1 // pred_check
      _
    $region23: #{tpu_custom_call.1} parent=1 // pred_check_branch
      %224 = sbr.rel (0) target = $region25
    $region24: #{tpu_custom_call.1} parent=1 // pred_region
      %226 = dma.done [#allocation4], 32
    $region25: #{tpu_custom_call.1} parent=1 // pred_fallthru
      _
    %227 = vsyncpa [#allocation3], 1
    %228 = vsyncpa [#allocation6], 1
    %229 = vsyncpa [#allocation4], 1

</llo_original>
